<compile_context>
chip_gen: v5e
topology: v5e:2x2
jax: 0.10.0
libtpu: 0.0.40
codegen_flags: <defaults>
</compile_context>

<pallas_src>
import jax
import jax.numpy as jnp
from jax.experimental import pallas as pl
from jax.experimental.pallas import tpu as pltpu


def _colbert_loss_kernel(q_ref, qm_ref, dp_ref, dpm_ref, dn_ref, dnm_ref,
                         loss_ref):
    # q_ref  : (Bt, Lq, D)   query token embeddings (dtype passed through)
    # qm_ref : (Bt, 1, Lq)   query attention mask  (f32, lane-dense)
    # dp_ref : (Bt, Ld, D)   positive-doc token embeddings
    # dpm_ref: (Bt, 1, Ld)   positive-doc attention mask (f32, lane-dense)
    # dn_ref : (Bt, Ld, D)   negative-doc token embeddings
    # dnm_ref: (Bt, 1, Ld)   negative-doc attention mask (f32, lane-dense)
    # loss_ref: (1, 1, Bt)   per-item cross-entropy losses

    q = q_ref[...]

    # Token-token similarities on the MXU; contraction over D (batched
    # dot_general, no materialized transpose), f32 accumulation.
    sim_p = jnp.einsum('bqd,bkd->bqk', q, dp_ref[...],
                       preferred_element_type=jnp.float32)       # (Bt, Lq, Ld)
    sim_n = jnp.einsum('bqd,bkd->bqk', q, dn_ref[...],
                       preferred_element_type=jnp.float32)       # (Bt, Lq, Ld)

    # post_treat_emb on the doc side, applied post-matmul (equivalent for 0/1
    # masks): padded doc tokens contribute sim = 0, exactly as the reference
    # (which zeros their embeddings).  Broadcast over the Lq axis.
    sim_p = sim_p * dpm_ref[...]                                  # (Bt, 1, Ld)
    sim_n = sim_n * dnm_ref[...]

    # MaxSim over doc tokens.
    max_p = jnp.max(sim_p, axis=-1)                               # (Bt, Lq)
    max_n = jnp.max(sim_n, axis=-1)                               # (Bt, Lq)

    # Query mask applied post-max (equivalent: masked query rows contribute
    # 0 in the reference), then sum over query tokens.
    qm = qm_ref[:, 0, :]                                          # (Bt, Lq)
    score_p = jnp.sum(max_p * qm, axis=-1)                        # (Bt,)
    score_n = jnp.sum(max_n * qm, axis=-1)                        # (Bt,)

    # CrossEntropyLoss on scores=[score_p, score_n] with label 0:
    #   loss_b = logsumexp([score_p, score_n]) - score_p   (numerically stable)
    m = jnp.maximum(score_p, score_n)
    lse = m + jnp.log(jnp.exp(score_p - m) + jnp.exp(score_n - m))
    loss_ref[0, 0, :] = lse - score_p


def _pick_batch_tile(B, per_item_bytes, *, vmem_budget_bytes=24 << 20,
                     min_steps=4):
    """Largest divisor of B whose double-buffered footprint fits the budget
    while leaving at least `min_steps` grid steps (relaxed to 2, then 1)."""
    divisors = sorted((d for d in range(1, B + 1) if B % d == 0), reverse=True)
    for target_steps in (min_steps, 2, 1):
        for bt in divisors:
            if B // bt < target_steps:
                continue
            if 2 * bt * per_item_bytes <= vmem_budget_bytes:
                return bt
    return 1


def colbert_loss(q_emb, q_mask, dpos_emb, dpos_mask, dneg_emb, dneg_mask,
                 *, batch_tile=None):
    """q_emb: [B, Lq, D], dpos_emb/dneg_emb: [B, Ld, D], masks: [B, L] (0/1).

    batch_tile: batch items per grid step (must divide B).  If None it is
    derived so the grid has >= 4 steps (pipelining, v7x dual-TC sharding)
    while the double-buffered per-step footprint fits a conservative VMEM
    budget.  Embedding dtype is passed through (bf16 recommended for real
    ColBERT sizes); masks are converted to lane-dense f32 [B, 1, L].
    """
    B, Lq, D = q_emb.shape
    _, Ld, _ = dpos_emb.shape
    assert dneg_emb.shape == dpos_emb.shape

    emb_bytes = jnp.dtype(q_emb.dtype).itemsize
    # Per-item bytes DMA'd into VMEM each step (embeddings + f32 masks).
    per_item_bytes = (Lq + 2 * Ld) * D * emb_bytes + (Lq + 2 * Ld) * 4

    if batch_tile is None:
        batch_tile = _pick_batch_tile(B, per_item_bytes)
    assert B % batch_tile == 0, "batch_tile must divide B"
    nb = B // batch_tile

    # Lane-dense f32 masks with a size-1 sublane dim (keeps (8,128) block
    # rules trivially satisfied for any batch_tile).
    qm = q_mask.astype(jnp.float32).reshape(B, 1, Lq)
    dpm = dpos_mask.astype(jnp.float32).reshape(B, 1, Ld)
    dnm = dneg_mask.astype(jnp.float32).reshape(B, 1, Ld)

    # Explicit VMEM limit: double-buffered inputs + output + headroom,
    # clamped to stay comfortably under v7x's 64 MiB physical VMEM.
    vmem_needed = 2 * batch_tile * per_item_bytes + 2 * batch_tile * 4
    vmem_limit = int(min(56 << 20, max(vmem_needed + (4 << 20), 16 << 20)))

    # Advisory cost estimate so XLA can overlap this HBM-bound kernel with
    # the surrounding encoder ops.
    flops = 2 * B * Lq * (2 * Ld) * D          # two (Lq,D)x(D,Ld) matmuls/item
    bytes_accessed = B * per_item_bytes + B * 4
    cost = pl.CostEstimate(flops=flops, transcendentals=3 * B,
                           bytes_accessed=bytes_accessed)

    per_item = pl.pallas_call(
        _colbert_loss_kernel,
        out_shape=jax.ShapeDtypeStruct((nb, 1, batch_tile), jnp.float32),
        grid_spec=pltpu.PrefetchScalarGridSpec(
            num_scalar_prefetch=0,
            grid=(nb,),
            in_specs=[
                pl.BlockSpec((batch_tile, Lq, D), lambda b: (b, 0, 0)),
                pl.BlockSpec((batch_tile, 1, Lq), lambda b: (b, 0, 0)),
                pl.BlockSpec((batch_tile, Ld, D), lambda b: (b, 0, 0)),
                pl.BlockSpec((batch_tile, 1, Ld), lambda b: (b, 0, 0)),
                pl.BlockSpec((batch_tile, Ld, D), lambda b: (b, 0, 0)),
                pl.BlockSpec((batch_tile, 1, Ld), lambda b: (b, 0, 0)),
            ],
            out_specs=pl.BlockSpec((1, 1, batch_tile), lambda b: (b, 0, 0)),
        ),
        compiler_params=pltpu.CompilerParams(
            dimension_semantics=("parallel",),   # independent batch steps
            vmem_limit_bytes=vmem_limit),
        cost_estimate=cost,
    )(q_emb, qm, dpos_emb, dpm, dneg_emb, dnm)

    # CrossEntropyLoss default reduction = 'mean' (B scalars; free in JAX).
    return jnp.mean(per_item)


def _reference_loss(q_emb, q_mask, dpos_emb, dpos_mask, dneg_emb, dneg_mask):
    """Pure-JAX reference mirroring the PyTorch forward."""
    q = q_emb * q_mask[..., None]
    dp = dpos_emb * dpos_mask[..., None]
    dn = dneg_emb * dneg_mask[..., None]
    sim_p = jnp.einsum('bqd,bkd->bqk', q, dp)
    sim_n = jnp.einsum('bqd,bkd->bqk', q, dn)
    sp = jnp.sum(jnp.max(sim_p, axis=-1), axis=-1)
    sn = jnp.sum(jnp.max(sim_n, axis=-1), axis=-1)
    scores = jnp.stack([sp, sn], axis=1)
    logp0 = scores[:, 0] - jax.scipy.special.logsumexp(scores, axis=1)
    return -jnp.mean(logp0)


if __name__ == "__main__":
    B, Lq, Ld, D = 8, 8, 16, 32
    key = jax.random.PRNGKey(0)
    k1, k2, k3 = jax.random.split(key, 3)

    q_emb = jax.random.normal(k1, (B, Lq, D), dtype=jnp.float32) * 0.1
    dpos_emb = jax.random.normal(k2, (B, Ld, D), dtype=jnp.float32) * 0.1
    dneg_emb = jax.random.normal(k3, (B, Ld, D), dtype=jnp.float32) * 0.1

    # Deterministic attention masks (some trailing padding tokens).
    q_lens = jnp.array([8, 6, 7, 5, 8, 4, 6, 7])
    p_lens = jnp.array([16, 12, 10, 14, 16, 8, 13, 11])
    n_lens = jnp.array([15, 9, 16, 11, 12, 16, 10, 14])
    q_mask = (jnp.arange(Lq)[None, :] < q_lens[:, None]).astype(jnp.float32)
    dpos_mask = (jnp.arange(Ld)[None, :] < p_lens[:, None]).astype(jnp.float32)
    dneg_mask = (jnp.arange(Ld)[None, :] < n_lens[:, None]).astype(jnp.float32)

    # batch_tile auto-derived (here: 2 items/step -> 4 pipelined grid steps).
    loss = colbert_loss(q_emb, q_mask, dpos_emb, dpos_mask,
                        dneg_emb, dneg_mask)
    jax.block_until_ready(loss)

    ref = _reference_loss(q_emb, q_mask, dpos_emb, dpos_mask, dneg_emb,
                          dneg_mask)
    assert jnp.allclose(loss, ref, atol=1e-5, rtol=1e-5), (loss, ref)

    print("KERNEL_OK")
</pallas_src>

<mosaic_0001>
module attributes {stable_mosaic.version = 11 : i64} {
  func.func @_colbert_loss_kernel(%arg0: i32, %arg1: memref<2x8x32xf32, #tpu.memory_space<vmem>>, %arg2: memref<2x1x8xf32, #tpu.memory_space<vmem>>, %arg3: memref<2x16x32xf32, #tpu.memory_space<vmem>>, %arg4: memref<2x1x16xf32, #tpu.memory_space<vmem>>, %arg5: memref<2x16x32xf32, #tpu.memory_space<vmem>>, %arg6: memref<2x1x16xf32, #tpu.memory_space<vmem>>, %arg7: memref<1x1x2xf32, #tpu.memory_space<vmem>>) attributes {dimension_semantics = [#tpu.dimension_semantics<parallel>], iteration_bounds = array<i64: 4>, scalar_prefetch = 0 : i64, scratch_operands = 0 : i64, tpu.core_type = #tpu.core_type<tc>, window_params = [{transform_indices = @transform_0, window_bounds = array<i64: 2, 8, 32>}, {transform_indices = @transform_1, window_bounds = array<i64: 2, 1, 8>}, {transform_indices = @transform_2, window_bounds = array<i64: 2, 16, 32>}, {transform_indices = @transform_3, window_bounds = array<i64: 2, 1, 16>}, {transform_indices = @transform_4, window_bounds = array<i64: 2, 16, 32>}, {transform_indices = @transform_5, window_bounds = array<i64: 2, 1, 16>}, {transform_indices = @transform_6, window_bounds = array<i64: 1, 1, 2>}]} {
    %c0 = arith.constant 0 : index
    %c0_0 = arith.constant 0 : index
    %c0_1 = arith.constant 0 : index
    %0 = vector.load %arg1[%c0, %c0_0, %c0_1] : memref<2x8x32xf32, #tpu.memory_space<vmem>>, vector<2x8x32xf32>
    %c0_2 = arith.constant 0 : index
    %c0_3 = arith.constant 0 : index
    %c0_4 = arith.constant 0 : index
    %1 = vector.load %arg3[%c0_2, %c0_3, %c0_4] : memref<2x16x32xf32, #tpu.memory_space<vmem>>, vector<2x16x32xf32>
    "tpu.trace_start"() <{level = 10 : i32, message = "bqd,bkd->bqk"}> : () -> ()
    %cst = arith.constant dense<0.000000e+00> : vector<2x8x16xf32>
    %2 = tpu.matmul %0, %1, %cst {dimension_numbers = #tpu.dot_dimension_numbers<[2], [2], [1], [1], [0, 0, 0, 1, 1, 1], [0], [0]>} : vector<2x8x32xf32>, vector<2x16x32xf32>, vector<2x8x16xf32> -> vector<2x8x16xf32>
    "tpu.trace_stop"() : () -> ()
    %c0_5 = arith.constant 0 : index
    %c0_6 = arith.constant 0 : index
    %c0_7 = arith.constant 0 : index
    %3 = vector.load %arg5[%c0_5, %c0_6, %c0_7] : memref<2x16x32xf32, #tpu.memory_space<vmem>>, vector<2x16x32xf32>
    "tpu.trace_start"() <{level = 10 : i32, message = "bqd,bkd->bqk"}> : () -> ()
    %cst_8 = arith.constant dense<0.000000e+00> : vector<2x8x16xf32>
    %4 = tpu.matmul %0, %3, %cst_8 {dimension_numbers = #tpu.dot_dimension_numbers<[2], [2], [1], [1], [0, 0, 0, 1, 1, 1], [0], [0]>} : vector<2x8x32xf32>, vector<2x16x32xf32>, vector<2x8x16xf32> -> vector<2x8x16xf32>
    "tpu.trace_stop"() : () -> ()
    %c0_9 = arith.constant 0 : index
    %c0_10 = arith.constant 0 : index
    %c0_11 = arith.constant 0 : index
    %5 = vector.load %arg4[%c0_9, %c0_10, %c0_11] : memref<2x1x16xf32, #tpu.memory_space<vmem>>, vector<2x1x16xf32>
    %6 = vector.broadcast %5 : vector<2x1x16xf32> to vector<2x8x16xf32>
    %7 = arith.mulf %2, %6 : vector<2x8x16xf32>
    %c0_12 = arith.constant 0 : index
    %c0_13 = arith.constant 0 : index
    %c0_14 = arith.constant 0 : index
    %8 = vector.load %arg6[%c0_12, %c0_13, %c0_14] : memref<2x1x16xf32, #tpu.memory_space<vmem>>, vector<2x1x16xf32>
    %9 = vector.broadcast %8 : vector<2x1x16xf32> to vector<2x8x16xf32>
    %10 = arith.mulf %4, %9 : vector<2x8x16xf32>
    %cst_15 = arith.constant dense<0xFF800000> : vector<2x8xf32>
    %11 = vector.multi_reduction <maximumf>, %7, %cst_15 [2] : vector<2x8x16xf32> to vector<2x8xf32>
    %cst_16 = arith.constant dense<0xFF800000> : vector<2x8xf32>
    %12 = vector.multi_reduction <maximumf>, %10, %cst_16 [2] : vector<2x8x16xf32> to vector<2x8xf32>
    %c0_17 = arith.constant 0 : index
    %c0_18 = arith.constant 0 : index
    %c0_19 = arith.constant 0 : index
    %13 = vector.load %arg2[%c0_17, %c0_18, %c0_19] : memref<2x1x8xf32, #tpu.memory_space<vmem>>, vector<2x1x8xf32>
    %14 = vector.shape_cast %13 : vector<2x1x8xf32> to vector<2x8xf32>
    %15 = arith.mulf %11, %14 : vector<2x8xf32>
    %cst_20 = arith.constant dense<0.000000e+00> : vector<2xf32>
    %16 = vector.multi_reduction <add>, %15, %cst_20 [1] : vector<2x8xf32> to vector<2xf32>
    %17 = arith.mulf %12, %14 : vector<2x8xf32>
    %cst_21 = arith.constant dense<0.000000e+00> : vector<2xf32>
    %18 = vector.multi_reduction <add>, %17, %cst_21 [1] : vector<2x8xf32> to vector<2xf32>
    %19 = arith.maximumf %16, %18 : vector<2xf32>
    %20 = arith.subf %16, %19 : vector<2xf32>
    %21 = math.exp %20 : vector<2xf32>
    %22 = arith.subf %18, %19 : vector<2xf32>
    %23 = math.exp %22 : vector<2xf32>
    %24 = arith.addf %21, %23 : vector<2xf32>
    %25 = math.log %24 : vector<2xf32>
    %26 = arith.addf %19, %25 : vector<2xf32>
    %27 = arith.subf %26, %16 : vector<2xf32>
    %c0_22 = arith.constant 0 : index
    %c0_23 = arith.constant 0 : index
    %c0_24 = arith.constant 0 : index
    %28 = vector.load %arg7[%c0_22, %c0_23, %c0_24] : memref<1x1x2xf32, #tpu.memory_space<vmem>>, vector<1x1x2xf32>
    %29 = vector.shape_cast %28 : vector<1x1x2xf32> to vector<2xf32>
    %30 = vector.shape_cast %27 : vector<2xf32> to vector<1x1x2xf32>
    tpu.vector_store %arg7[%c0_22, %c0_23, %c0_24], %30 {strides = array<i32>} : memref<1x1x2xf32, #tpu.memory_space<vmem>>, vector<1x1x2xf32>,
    return
  }
  func.func @transform_0(%arg0: i32) -> (i32, i32, i32) {
    %c0_i32 = arith.constant 0 : i32
    %c0_i32_0 = arith.constant 0 : i32
    %c0_i32_1 = arith.constant 0 : i32
    return %arg0, %c0_i32, %c0_i32_0 : i32, i32, i32
  }
  func.func @transform_1(%arg0: i32) -> (i32, i32, i32) {
    %c0_i32 = arith.constant 0 : i32
    %c0_i32_0 = arith.constant 0 : i32
    %c0_i32_1 = arith.constant 0 : i32
    return %arg0, %c0_i32, %c0_i32_0 : i32, i32, i32
  }
  func.func @transform_2(%arg0: i32) -> (i32, i32, i32) {
    %c0_i32 = arith.constant 0 : i32
    %c0_i32_0 = arith.constant 0 : i32
    %c0_i32_1 = arith.constant 0 : i32
    return %arg0, %c0_i32, %c0_i32_0 : i32, i32, i32
  }
  func.func @transform_3(%arg0: i32) -> (i32, i32, i32) {
    %c0_i32 = arith.constant 0 : i32
    %c0_i32_0 = arith.constant 0 : i32
    %c0_i32_1 = arith.constant 0 : i32
    return %arg0, %c0_i32, %c0_i32_0 : i32, i32, i32
  }
  func.func @transform_4(%arg0: i32) -> (i32, i32, i32) {
    %c0_i32 = arith.constant 0 : i32
    %c0_i32_0 = arith.constant 0 : i32
    %c0_i32_1 = arith.constant 0 : i32
    return %arg0, %c0_i32, %c0_i32_0 : i32, i32, i32
  }
  func.func @transform_5(%arg0: i32) -> (i32, i32, i32) {
    %c0_i32 = arith.constant 0 : i32
    %c0_i32_0 = arith.constant 0 : i32
    %c0_i32_1 = arith.constant 0 : i32
    return %arg0, %c0_i32, %c0_i32_0 : i32, i32, i32
  }
  func.func @transform_6(%arg0: i32) -> (i32, i32, i32) {
    %c0_i32 = arith.constant 0 : i32
    %c0_i32_0 = arith.constant 0 : i32
    %c0_i32_1 = arith.constant 0 : i32
    return %arg0, %c0_i32, %c0_i32_0 : i32, i32, i32
  }
}

</mosaic_0001>

<llo_original>
// kernel: tpu_custom_call.1
$region0: #{tpu_custom_call.1}
  #allocation0 [shape = 'u32[]', space=smem, size = 0x4, offset = 0x4, fixed_abs, tag = 'smem constant byte address 0x4 - core index']
  #allocation1 [shape = 'u32[72,128]{1,0:T(1,128)}', space=vmem, size = 0x9000, scoped, tag = 'internal scratch']
  %s0 = inlined_call_operand.hbm [shape: f32[8,8,32], index: 0, kind: input, shape index: {}]
  %s1 = inlined_call_operand.hbm [shape: f32[8,1,8], index: 1, kind: input, shape index: {}]
  %s2 = inlined_call_operand.hbm [shape: f32[8,16,32], index: 2, kind: input, shape index: {}]
  %s3 = inlined_call_operand.hbm [shape: f32[8,1,16], index: 3, kind: input, shape index: {}]
  %s4 = inlined_call_operand.hbm [shape: f32[8,16,32], index: 4, kind: input, shape index: {}]
  %s5 = inlined_call_operand.hbm [shape: f32[8,1,16], index: 5, kind: input, shape index: {}]
  %s6 = inlined_call_operand.vmem [shape: f32[4,1,2], index: 6, kind: output, shape index: {}]
  %s7 = sld [smem:[#allocation0]]
  $region81: #{tpu_custom_call.1} parent=0
    _
  %s9 = ssub.s32 1, %s7
  %s10 = scalar_select 0, %s9, %s7
  $region1: #{tpu_custom_call.1} parent=0
    #allocation2 [shape = 'u8[16384]{0}', space=vmem, size = 0x4000, scoped, tag = 'input window, operand 0']
    #allocation3 [shape = 's32[2]{0}', space=sflag, size = 0x8, scoped, tag = 'scoped memory for tpu_custom_call.1']
    #allocation4 [shape = 'u8[2048]{0}', space=vmem, size = 0x800, scoped, tag = 'input window, operand 1']
    #allocation5 [shape = 's32[2]{0}', space=sflag, size = 0x8, scoped, tag = 'scoped memory for tpu_custom_call.1']
    #allocation6 [shape = 'u8[32768]{0}', space=vmem, size = 0x8000, scoped, tag = 'input window, operand 2']
    #allocation7 [shape = 'u8[2048]{0}', space=vmem, size = 0x800, scoped, tag = 'input window, operand 3']
    #allocation8 [shape = 's32[2]{0}', space=sflag, size = 0x8, scoped, tag = 'scoped memory for tpu_custom_call.1']
    #allocation9 [shape = 'u8[32768]{0}', space=vmem, size = 0x8000, scoped, tag = 'input window, operand 4']
    #allocation10 [shape = 'u8[2048]{0}', space=vmem, size = 0x800, scoped, tag = 'input window, operand 5']
    #allocation11 [shape = 's32[2]{0}', space=sflag, size = 0x8, scoped, tag = 'scoped memory for tpu_custom_call.1']
    %11 = vsyncpa [#allocation3], 0
    %s12 = scalar_lea.sflag [#allocation3], 1
    %13 = vsyncpa %s12, 0
    %14 = vsyncpa [#allocation5], 0
    %s15 = scalar_lea.sflag [#allocation5], 1
    %16 = vsyncpa %s15, 0
    %17 = vsyncpa [#allocation8], 0
    %s18 = scalar_lea.sflag [#allocation8], 1
    %19 = vsyncpa %s18, 0
    %20 = vsyncpa [#allocation11], 0
    %s21 = scalar_lea.sflag [#allocation11], 1
    %22 = vsyncpa %s21, 0
    loop: start=0, step=1, limit=6
    $region2: #{tpu_custom_call.1} parent=1 // loop_pre_header
      _
    $region3: #{tpu_custom_call.1} parent=1 // loop_header
      %s24 = sphi 0, %s28
      %p25 = scmp.ge.s32.totalorder %s24, 6
      %s34 = sphi 0, %s36
      %s37 = sphi 0, %s34
      %s38 = sphi 0, %s37
      %s54 = sphi 0, %s38
      %s60 = sphi 0, %s62
      %s63 = sphi 0, %s60
      %s64 = sphi 0, %s63
      %s80 = sphi 0, %s64
      %s86 = sphi 0, %s88
      %s89 = sphi 0, %s86
      %s90 = sphi 0, %s89
      %s106 = sphi 0, %s90
      %s112 = sphi 0, %s114
      %s115 = sphi 0, %s112
      %s116 = sphi 0, %s115
      %s132 = sphi 0, %s116
      %s138 = sphi 0, %s140
      %s141 = sphi 0, %s138
      %s142 = sphi 0, %s141
      %s158 = sphi 0, %s142
      %s164 = sphi 0, %s166
      %s167 = sphi 0, %s164
      %s168 = sphi 0, %s167
      %s184 = sphi 0, %s168
      %s190 = sphi 0, %s192
      %s193 = sphi 0, %s190
      %s194 = sphi 0, %s193
      %s210 = sphi 0, %s194
    $region4: #{tpu_custom_call.1} parent=1 // loop_header_branch
      %27 = sbr.rel (%p25) target = $region8
    $region5: #{tpu_custom_call.1} parent=1 // loop_body
      %s29 = ssub.s32 %s24, 1
      %s30 = ssub.s32 %s24, 2
      %s31 = sadd.s32 %s24, 1
      %s32 = ssub.s32 %s24, %s31
      %p33 = scmp.eq.s32.totalorder %s32, 0
      %s35 = sadd.s32 %s34, 1
      %s36 = scalar_select %p33, %s34, %s35
      %p39 = pneg %p33
      %p40 = scmp.eq.s32.totalorder %s24, 3
      %p41 = por %p39, %p40
      %p42 = scmp.ne.s32.totalorder %s34, %s37
      %p43 = scmp.eq.s32.totalorder %s24, 0
      %p44 = por %p42, %p43
      %p45 = scmp.ne.s32.totalorder %s34, %s37
      %p46 = scmp.eq.s32.totalorder %s29, 3
      %p47 = por %p45, %p46
      %p48 = scmp.ne.s32.totalorder %s37, %s38
      %p49 = scmp.eq.s32.totalorder %s29, 0
      %p50 = por %p48, %p49
      %p51 = scmp.ne.s32.totalorder %s37, %s38
      %p52 = scmp.eq.s32.totalorder %s30, 3
      %p53 = por %p51, %p52
      %p55 = scmp.ne.s32.totalorder %s38, %s54
      %p56 = scmp.eq.s32.totalorder %s30, 0
      %p57 = por %p55, %p56
      %s58 = ssub.s32 %s24, %s31
      %p59 = scmp.eq.s32.totalorder %s58, 0
      %s61 = sadd.s32 %s60, 1
      %s62 = scalar_select %p59, %s60, %s61
      %p65 = pneg %p59
      %p66 = scmp.eq.s32.totalorder %s24, 3
      %p67 = por %p65, %p66
      %p68 = scmp.ne.s32.totalorder %s60, %s63
      %p69 = scmp.eq.s32.totalorder %s24, 0
      %p70 = por %p68, %p69
      %p71 = scmp.ne.s32.totalorder %s60, %s63
      %p72 = scmp.eq.s32.totalorder %s29, 3
      %p73 = por %p71, %p72
      %p74 = scmp.ne.s32.totalorder %s63, %s64
      %p75 = scmp.eq.s32.totalorder %s29, 0
      %p76 = por %p74, %p75
      %p77 = scmp.ne.s32.totalorder %s63, %s64
      %p78 = scmp.eq.s32.totalorder %s30, 3
      %p79 = por %p77, %p78
      %p81 = scmp.ne.s32.totalorder %s64, %s80
      %p82 = scmp.eq.s32.totalorder %s30, 0
      %p83 = por %p81, %p82
      %s84 = ssub.s32 %s24, %s31
      %p85 = scmp.eq.s32.totalorder %s84, 0
      %s87 = sadd.s32 %s86, 1
      %s88 = scalar_select %p85, %s86, %s87
      %p91 = pneg %p85
      %p92 = scmp.eq.s32.totalorder %s24, 3
      %p93 = por %p91, %p92
      %p94 = scmp.ne.s32.totalorder %s86, %s89
      %p95 = scmp.eq.s32.totalorder %s24, 0
      %p96 = por %p94, %p95
      %p97 = scmp.ne.s32.totalorder %s86, %s89
      %p98 = scmp.eq.s32.totalorder %s29, 3
      %p99 = por %p97, %p98
      %p100 = scmp.ne.s32.totalorder %s89, %s90
      %p101 = scmp.eq.s32.totalorder %s29, 0
      %p102 = por %p100, %p101
      %p103 = scmp.ne.s32.totalorder %s89, %s90
      %p104 = scmp.eq.s32.totalorder %s30, 3
      %p105 = por %p103, %p104
      %p107 = scmp.ne.s32.totalorder %s90, %s106
      %p108 = scmp.eq.s32.totalorder %s30, 0
      %p109 = por %p107, %p108
      %s110 = ssub.s32 %s24, %s31
      %p111 = scmp.eq.s32.totalorder %s110, 0
      %s113 = sadd.s32 %s112, 1
      %s114 = scalar_select %p111, %s112, %s113
      %p117 = pneg %p111
      %p118 = scmp.eq.s32.totalorder %s24, 3
      %p119 = por %p117, %p118
      %p120 = scmp.ne.s32.totalorder %s112, %s115
      %p121 = scmp.eq.s32.totalorder %s24, 0
      %p122 = por %p120, %p121
      %p123 = scmp.ne.s32.totalorder %s112, %s115
      %p124 = scmp.eq.s32.totalorder %s29, 3
      %p125 = por %p123, %p124
      %p126 = scmp.ne.s32.totalorder %s115, %s116
      %p127 = scmp.eq.s32.totalorder %s29, 0
      %p128 = por %p126, %p127
      %p129 = scmp.ne.s32.totalorder %s115, %s116
      %p130 = scmp.eq.s32.totalorder %s30, 3
      %p131 = por %p129, %p130
      %p133 = scmp.ne.s32.totalorder %s116, %s132
      %p134 = scmp.eq.s32.totalorder %s30, 0
      %p135 = por %p133, %p134
      %s136 = ssub.s32 %s24, %s31
      %p137 = scmp.eq.s32.totalorder %s136, 0
      %s139 = sadd.s32 %s138, 1
      %s140 = scalar_select %p137, %s138, %s139
      %p143 = pneg %p137
      %p144 = scmp.eq.s32.totalorder %s24, 3
      %p145 = por %p143, %p144
      %p146 = scmp.ne.s32.totalorder %s138, %s141
      %p147 = scmp.eq.s32.totalorder %s24, 0
      %p148 = por %p146, %p147
      %p149 = scmp.ne.s32.totalorder %s138, %s141
      %p150 = scmp.eq.s32.totalorder %s29, 3
      %p151 = por %p149, %p150
      %p152 = scmp.ne.s32.totalorder %s141, %s142
      %p153 = scmp.eq.s32.totalorder %s29, 0
      %p154 = por %p152, %p153
      %p155 = scmp.ne.s32.totalorder %s141, %s142
      %p156 = scmp.eq.s32.totalorder %s30, 3
      %p157 = por %p155, %p156
      %p159 = scmp.ne.s32.totalorder %s142, %s158
      %p160 = scmp.eq.s32.totalorder %s30, 0
      %p161 = por %p159, %p160
      %s162 = ssub.s32 %s24, %s31
      %p163 = scmp.eq.s32.totalorder %s162, 0
      %s165 = sadd.s32 %s164, 1
      %s166 = scalar_select %p163, %s164, %s165
      %p169 = pneg %p163
      %p170 = scmp.eq.s32.totalorder %s24, 3
      %p171 = por %p169, %p170
      %p172 = scmp.ne.s32.totalorder %s164, %s167
      %p173 = scmp.eq.s32.totalorder %s24, 0
      %p174 = por %p172, %p173
      %p175 = scmp.ne.s32.totalorder %s164, %s167
      %p176 = scmp.eq.s32.totalorder %s29, 3
      %p177 = por %p175, %p176
      %p178 = scmp.ne.s32.totalorder %s167, %s168
      %p179 = scmp.eq.s32.totalorder %s29, 0
      %p180 = por %p178, %p179
      %p181 = scmp.ne.s32.totalorder %s167, %s168
      %p182 = scmp.eq.s32.totalorder %s30, 3
      %p183 = por %p181, %p182
      %p185 = scmp.ne.s32.totalorder %s168, %s184
      %p186 = scmp.eq.s32.totalorder %s30, 0
      %p187 = por %p185, %p186
      %s188 = ssub.s32 %s24, %s31
      %p189 = scmp.eq.s32.totalorder %s188, 0
      %s191 = sadd.s32 %s190, 1
      %s192 = scalar_select %p189, %s190, %s191
      %p195 = pneg %p189
      %p196 = scmp.eq.s32.totalorder %s24, 3
      %p197 = por %p195, %p196
      %p198 = scmp.ne.s32.totalorder %s190, %s193
      %p199 = scmp.eq.s32.totalorder %s24, 0
      %p200 = por %p198, %p199
      %p201 = scmp.ne.s32.totalorder %s190, %s193
      %p202 = scmp.eq.s32.totalorder %s29, 3
      %p203 = por %p201, %p202
      %p204 = scmp.ne.s32.totalorder %s193, %s194
      %p205 = scmp.eq.s32.totalorder %s29, 0
      %p206 = por %p204, %p205
      %p207 = scmp.ne.s32.totalorder %s193, %s194
      %p208 = scmp.eq.s32.totalorder %s30, 3
      %p209 = por %p207, %p208
      %p211 = scmp.ne.s32.totalorder %s194, %s210
      %p212 = scmp.eq.s32.totalorder %s30, 0
      %p213 = por %p211, %p212
      %p214 = scmp.le.s32.totalorder 1, %s24
      %p215 = scmp.lt.s32.totalorder %s24, 5
      %p216 = pnand %p214, %p215
      %p217 = pneg %p216
      // Predicated region
      $region9: #{tpu_custom_call.1} parent=5 // pred_check
        _
      $region10: #{tpu_custom_call.1} parent=5 // pred_check_branch
        %219 = sbr.rel (%p216) target = $region12
      $region11: #{tpu_custom_call.1} parent=5 // pred_region
        %s220 = ssub.s32 %s24, 1
      $region12: #{tpu_custom_call.1} parent=5 // pred_fallthru
        _
      %p221 = scmp.lt.s32.totalorder %s24, 4
      // Predicated region
      $region13: #{tpu_custom_call.1} parent=5 // pred_check
        %p222 = pneg %p221
      $region14: #{tpu_custom_call.1} parent=5 // pred_check_branch
        %224 = sbr.rel (%p222) target = $region16
      $region15: #{tpu_custom_call.1} parent=5 // pred_region
        // Predicated region
        $region17: #{tpu_custom_call.1} parent=15 // pred_check
          %p225 = pneg %p44
        $region18: #{tpu_custom_call.1} parent=15 // pred_check_branch
          %227 = sbr.rel (%p225) target = $region20
        $region19: #{tpu_custom_call.1} parent=15 // pred_region
          %s228 = sand.u32 %s34, 1
          %s229 = scalar_lea.sflag [#allocation3], %s228
          %s230 = sand.u32 %s34, 1
          %s231 = smul.addr %s230, 16
          %s232 = scalar_lea.vmem [#allocation2], %s231
          %s233 = smul.u32 2, %s24
          %235 = vsyncadd %s229, 0
          %s236 = smul.addr %s233, 8
          %s237 = scalar_lea.hbm %s0, %s236
          %s238 = sshll.u32 %s237, 4
          %s239 = int_to_ptr.hbm [resolvable:$true] %s238
          %s240 = sshll.u32 %s232, 4
          %s241 = int_to_ptr.vmem [resolvable:$true] %s240
          %246 = dma.hbm_to_vmem [thread:$0]  %s239, 256, %s241, %s229, 128, 128, 8
        $region20: #{tpu_custom_call.1} parent=15 // pred_fallthru
          _
        // Predicated region
        $region21: #{tpu_custom_call.1} parent=15 // pred_check
          %p247 = pneg %p70
        $region22: #{tpu_custom_call.1} parent=15 // pred_check_branch
          %249 = sbr.rel (%p247) target = $region24
        $region23: #{tpu_custom_call.1} parent=15 // pred_region
          %s250 = sand.u32 %s24, 1
          %s251 = scalar_lea.sflag [#allocation5], %s250
          %s252 = sand.u32 %s60, 1
          %s253 = smul.addr %s252, 2
          %s254 = scalar_lea.vmem [#allocation4], %s253
          %s255 = smul.u32 2, %s24
          %257 = vsyncadd %s251, 0
          %s258 = scalar_lea.hbm %s1, %s255
          %s259 = sshll.u32 %s258, 4
          %s260 = int_to_ptr.hbm [resolvable:$true] %s259
          %s261 = sshll.u32 %s254, 4
          %s262 = int_to_ptr.vmem [resolvable:$true] %s261
          %267 = dma.hbm_to_vmem [thread:$0]  %s260, 32, %s262, %s251, 16, 16, 1
        $region24: #{tpu_custom_call.1} parent=15 // pred_fallthru
          _
        // Predicated region
        $region25: #{tpu_custom_call.1} parent=15 // pred_check
          %p268 = pneg %p96
        $region26: #{tpu_custom_call.1} parent=15 // pred_check_branch
          %270 = sbr.rel (%p268) target = $region28
        $region27: #{tpu_custom_call.1} parent=15 // pred_region
          %s271 = sand.u32 %s24, 1
          %s272 = scalar_lea.sflag [#allocation5], %s271
          %s273 = sand.u32 %s86, 1
          %s274 = smul.addr %s273, 32
          %s275 = scalar_lea.vmem [#allocation6], %s274
          %s276 = smul.u32 2, %s24
          %278 = vsyncadd %s272, 0
          %s279 = smul.addr %s276, 2
          %s280 = smul.addr %s279, 8
          %s281 = scalar_lea.hbm %s2, %s280
          %s282 = sshll.u32 %s281, 4
          %s283 = int_to_ptr.hbm [resolvable:$true] %s282
          %s284 = sshll.u32 %s275, 4
          %s285 = int_to_ptr.vmem [resolvable:$true] %s284
          %290 = dma.hbm_to_vmem [thread:$0]  %s283, 512, %s285, %s272, 128, 128, 8
        $region28: #{tpu_custom_call.1} parent=15 // pred_fallthru
          _
        // Predicated region
        $region29: #{tpu_custom_call.1} parent=15 // pred_check
          %p291 = pneg %p122
        $region30: #{tpu_custom_call.1} parent=15 // pred_check_branch
          %293 = sbr.rel (%p291) target = $region32
        $region31: #{tpu_custom_call.1} parent=15 // pred_region
          %s294 = sand.u32 %s24, 1
          %s295 = scalar_lea.sflag [#allocation8], %s294
          %s296 = sand.u32 %s112, 1
          %s297 = smul.addr %s296, 2
          %s298 = scalar_lea.vmem [#allocation7], %s297
          %s299 = smul.u32 2, %s24
          %301 = vsyncadd %s295, 0
          %s302 = scalar_lea.hbm %s3, %s299
          %s303 = sshll.u32 %s302, 4
          %s304 = int_to_ptr.hbm [resolvable:$true] %s303
          %s305 = sshll.u32 %s298, 4
          %s306 = int_to_ptr.vmem [resolvable:$true] %s305
          %311 = dma.hbm_to_vmem [thread:$0]  %s304, 32, %s306, %s295, 16, 16, 1
        $region32: #{tpu_custom_call.1} parent=15 // pred_fallthru
          _
        // Predicated region
        $region33: #{tpu_custom_call.1} parent=15 // pred_check
          %p312 = pneg %p148
        $region34: #{tpu_custom_call.1} parent=15 // pred_check_branch
          %314 = sbr.rel (%p312) target = $region36
        $region35: #{tpu_custom_call.1} parent=15 // pred_region
          %s315 = sand.u32 %s24, 1
          %s316 = scalar_lea.sflag [#allocation8], %s315
          %s317 = sand.u32 %s138, 1
          %s318 = smul.addr %s317, 32
          %s319 = scalar_lea.vmem [#allocation9], %s318
          %s320 = smul.u32 2, %s24
          %322 = vsyncadd %s316, 0
          %s323 = smul.addr %s320, 2
          %s324 = smul.addr %s323, 8
          %s325 = scalar_lea.hbm %s4, %s324
          %s326 = sshll.u32 %s325, 4
          %s327 = int_to_ptr.hbm [resolvable:$true] %s326
          %s328 = sshll.u32 %s319, 4
          %s329 = int_to_ptr.vmem [resolvable:$true] %s328
          %334 = dma.hbm_to_vmem [thread:$0]  %s327, 512, %s329, %s316, 128, 128, 8
        $region36: #{tpu_custom_call.1} parent=15 // pred_fallthru
          _
        // Predicated region
        $region37: #{tpu_custom_call.1} parent=15 // pred_check
          %p335 = pneg %p174
        $region38: #{tpu_custom_call.1} parent=15 // pred_check_branch
          %337 = sbr.rel (%p335) target = $region40
        $region39: #{tpu_custom_call.1} parent=15 // pred_region
          %s338 = sand.u32 %s164, 1
          %s339 = scalar_lea.sflag [#allocation11], %s338
          %s340 = sand.u32 %s164, 1
          %s341 = smul.addr %s340, 2
          %s342 = scalar_lea.vmem [#allocation10], %s341
          %s343 = smul.u32 2, %s24
          %345 = vsyncadd %s339, 0
          %s346 = scalar_lea.hbm %s5, %s343
          %s347 = sshll.u32 %s346, 4
          %s348 = int_to_ptr.hbm [resolvable:$true] %s347
          %s349 = sshll.u32 %s342, 4
          %s350 = int_to_ptr.vmem [resolvable:$true] %s349
          %355 = dma.hbm_to_vmem [thread:$0]  %s348, 32, %s350, %s339, 16, 16, 1
        $region40: #{tpu_custom_call.1} parent=15 // pred_fallthru
          _
      $region16: #{tpu_custom_call.1} parent=5 // pred_fallthru
        _
      %p356 = scmp.le.s32.totalorder 1, %s24
      %p357 = scmp.lt.s32.totalorder %s24, 5
      %p358 = pnand %p356, %p357
      %p359 = pneg %p358
      // Predicated region
      $region41: #{tpu_custom_call.1} parent=5 // pred_check
        _
      $region42: #{tpu_custom_call.1} parent=5 // pred_check_branch
        %361 = sbr.rel (%p358) target = $region44
      $region43: #{tpu_custom_call.1} parent=5 // pred_region
        %s362 = ssub.s32 %s24, 1
        %s363 = sand.u32 %s37, 1
        %s364 = scalar_lea.sflag [#allocation3], %s363
        %s365 = sand.u32 %s37, 1
        %s366 = smul.addr %s365, 16
        %s367 = scalar_lea.vmem [#allocation2], %s366
        // Predicated region
        $region45: #{tpu_custom_call.1} parent=43 // pred_check
          %p368 = pneg %p50
        $region46: #{tpu_custom_call.1} parent=43 // pred_check_branch
          %370 = sbr.rel (%p368) target = $region48
        $region47: #{tpu_custom_call.1} parent=43 // pred_region
          %372 = dma.done %s364, 256
        $region48: #{tpu_custom_call.1} parent=43 // pred_fallthru
          _
        %s373 = sand.u32 %s29, 1
        %s374 = scalar_lea.sflag [#allocation5], %s373
        %s375 = sand.u32 %s63, 1
        %s376 = smul.addr %s375, 2
        %s377 = scalar_lea.vmem [#allocation4], %s376
        // Predicated region
        $region49: #{tpu_custom_call.1} parent=43 // pred_check
          %p378 = pneg %p76
        $region50: #{tpu_custom_call.1} parent=43 // pred_check_branch
          %380 = sbr.rel (%p378) target = $region52
        $region51: #{tpu_custom_call.1} parent=43 // pred_region
          %382 = dma.done %s374, 32
        $region52: #{tpu_custom_call.1} parent=43 // pred_fallthru
          _
        %s383 = sand.u32 %s29, 1
        %s384 = scalar_lea.sflag [#allocation5], %s383
        %s385 = sand.u32 %s89, 1
        %s386 = smul.addr %s385, 32
        %s387 = scalar_lea.vmem [#allocation6], %s386
        // Predicated region
        $region53: #{tpu_custom_call.1} parent=43 // pred_check
          %p388 = pneg %p102
        $region54: #{tpu_custom_call.1} parent=43 // pred_check_branch
          %390 = sbr.rel (%p388) target = $region56
        $region55: #{tpu_custom_call.1} parent=43 // pred_region
          %392 = dma.done %s384, 512
        $region56: #{tpu_custom_call.1} parent=43 // pred_fallthru
          _
        %s393 = sand.u32 %s29, 1
        %s394 = scalar_lea.sflag [#allocation8], %s393
        %s395 = sand.u32 %s115, 1
        %s396 = smul.addr %s395, 2
        %s397 = scalar_lea.vmem [#allocation7], %s396
        // Predicated region
        $region57: #{tpu_custom_call.1} parent=43 // pred_check
          %p398 = pneg %p128
        $region58: #{tpu_custom_call.1} parent=43 // pred_check_branch
          %400 = sbr.rel (%p398) target = $region60
        $region59: #{tpu_custom_call.1} parent=43 // pred_region
          %402 = dma.done %s394, 32
        $region60: #{tpu_custom_call.1} parent=43 // pred_fallthru
          _
        %s403 = sand.u32 %s29, 1
        %s404 = scalar_lea.sflag [#allocation8], %s403
        %s405 = sand.u32 %s141, 1
        %s406 = smul.addr %s405, 32
        %s407 = scalar_lea.vmem [#allocation9], %s406
        // Predicated region
        $region61: #{tpu_custom_call.1} parent=43 // pred_check
          %p408 = pneg %p154
        $region62: #{tpu_custom_call.1} parent=43 // pred_check_branch
          %410 = sbr.rel (%p408) target = $region64
        $region63: #{tpu_custom_call.1} parent=43 // pred_region
          %412 = dma.done %s404, 512
        $region64: #{tpu_custom_call.1} parent=43 // pred_fallthru
          _
        %s413 = sand.u32 %s167, 1
        %s414 = scalar_lea.sflag [#allocation11], %s413
        %s415 = sand.u32 %s167, 1
        %s416 = smul.addr %s415, 2
        %s417 = scalar_lea.vmem [#allocation10], %s416
        // Predicated region
        $region65: #{tpu_custom_call.1} parent=43 // pred_check
          %p418 = pneg %p180
        $region66: #{tpu_custom_call.1} parent=43 // pred_check_branch
          %420 = sbr.rel (%p418) target = $region68
        $region67: #{tpu_custom_call.1} parent=43 // pred_region
          %422 = dma.done %s414, 32
        $region68: #{tpu_custom_call.1} parent=43 // pred_fallthru
          _
        %s423 = sand.u32 %s37, 1
        %s424 = scalar_lea.sflag [#allocation3], %s423
        %s425 = sand.u32 %s37, 1
        %s426 = smul.addr %s425, 16
        %s427 = scalar_lea.vmem [#allocation2], %s426
        %p428 = pneg %p50
        %p429 = pneg %p47
        %s430 = sand.u32 %s29, 1
        %s431 = scalar_lea.sflag [#allocation5], %s430
        %s432 = sand.u32 %s63, 1
        %s433 = smul.addr %s432, 2
        %s434 = scalar_lea.vmem [#allocation4], %s433
        %p435 = pneg %p76
        %p436 = pneg %p73
        %s437 = sand.u32 %s29, 1
        %s438 = scalar_lea.sflag [#allocation5], %s437
        %s439 = sand.u32 %s89, 1
        %s440 = smul.addr %s439, 32
        %s441 = scalar_lea.vmem [#allocation6], %s440
        %p442 = pneg %p102
        %p443 = pneg %p99
        %s444 = sand.u32 %s29, 1
        %s445 = scalar_lea.sflag [#allocation8], %s444
        %s446 = sand.u32 %s115, 1
        %s447 = smul.addr %s446, 2
        %s448 = scalar_lea.vmem [#allocation7], %s447
        %p449 = pneg %p128
        %p450 = pneg %p125
        %s451 = sand.u32 %s29, 1
        %s452 = scalar_lea.sflag [#allocation8], %s451
        %s453 = sand.u32 %s141, 1
        %s454 = smul.addr %s453, 32
        %s455 = scalar_lea.vmem [#allocation9], %s454
        %p456 = pneg %p154
        %p457 = pneg %p151
        %s458 = sand.u32 %s167, 1
        %s459 = scalar_lea.sflag [#allocation11], %s458
        %s460 = sand.u32 %s167, 1
        %s461 = smul.addr %s460, 2
        %s462 = scalar_lea.vmem [#allocation10], %s461
        %p463 = pneg %p180
        %p464 = pneg %p177
        %p465 = pneg %p206
        %p466 = pneg %p203
        %p467 = scmp.lt.s32.totalorder %s29, 3
        %s468 = scalar_select %p467, %s29, 3
        %s469 = scalar_lea.vmem %s6, %s468
        %s470 = smul.u32 2, %s29
        %s471 = smul.u32 2, %s29
        %s472 = smul.u32 2, %s29
        %s473 = smul.u32 2, %s29
        %s474 = smul.u32 2, %s29
        %s475 = smul.u32 2, %s29
        %p476 = scmp.lt.s32.totalorder %s29, 3
        %s477 = scalar_select %p476, %s29, 3
        %s478 = scalar_lea.vmem %s6, %s477
        %v479 = vld [vmem:[%s367] sm:$0xff]
        %v480 = vld [vmem:[%s367 + $0x8] sm:$0xff]
        %v481 = vld [vmem:[%s387] sm:$0xff]
        %v482 = vld [vmem:[%s387 + $0x8] sm:$0xff]
        %v483 = vld [vmem:[%s387 + $0x10] sm:$0xff]
        %v484 = vld [vmem:[%s387 + $0x18] sm:$0xff]
        %vm485 = vcmask 261120
        %v487 = vsel %vm485, %v479, 0
        %v490 = vsel %vm485, %v481, 0
        %v493 = vsel %vm485, %v482, 0
        %495 = vmatpush.xpose.msra.mxu0 0.0
        %496 = vmatpush.xpose.msra.mxu0 0.0
        %497 = vmatpush.xpose.msra.mxu0 0.0
        %498 = vmatpush.xpose.msra.mxu0 0.0
        %499 = vmatpush.xpose.msra.mxu0 0.0
        %500 = vmatpush.xpose.msra.mxu0 0.0
        %501 = vmatpush.xpose.msra.mxu0 0.0
        %502 = vmatpush.xpose.msra.mxu0 0.0
        %503 = vmatpush.xpose.msra.mxu0 0.0
        %504 = vmatpush.xpose.msra.mxu0 0.0
        %505 = vmatpush.xpose.msra.mxu0 0.0
        %506 = vmatpush.xpose.msra.mxu0 0.0
        %507 = vmatpush.xpose.msra.mxu0 0.0
        %508 = vmatpush.xpose.msra.mxu0 0.0
        %509 = vmatpush.xpose.msra.mxu0 %v493
        %510 = vmatpush.xpose.msra.mxu0 %v490
        %511 = vmatmul.f32.gmra.mxu0 %v487
        %v512 = vpop.f32.mrf.mxu0
        %v513 = vadd.f32 0.0, %v512
        %514 = vdwg.mxu0
        %v516 = vsel %vm485, %v480, 0
        %v519 = vsel %vm485, %v483, 0
        %v522 = vsel %vm485, %v484, 0
        %524 = vmatpush.xpose.msra.mxu0 0.0
        %525 = vmatpush.xpose.msra.mxu0 0.0
        %526 = vmatpush.xpose.msra.mxu0 0.0
        %527 = vmatpush.xpose.msra.mxu0 0.0
        %528 = vmatpush.xpose.msra.mxu0 0.0
        %529 = vmatpush.xpose.msra.mxu0 0.0
        %530 = vmatpush.xpose.msra.mxu0 0.0
        %531 = vmatpush.xpose.msra.mxu0 0.0
        %532 = vmatpush.xpose.msra.mxu0 0.0
        %533 = vmatpush.xpose.msra.mxu0 0.0
        %534 = vmatpush.xpose.msra.mxu0 0.0
        %535 = vmatpush.xpose.msra.mxu0 0.0
        %536 = vmatpush.xpose.msra.mxu0 0.0
        %537 = vmatpush.xpose.msra.mxu0 0.0
        %538 = vmatpush.xpose.msra.mxu0 %v522
        %539 = vmatpush.xpose.msra.mxu0 %v519
        %540 = vmatmul.f32.gmra.mxu0 %v516
        %v541 = vpop.f32.mrf.mxu0
        %v542 = vadd.f32 0.0, %v541
        %543 = vdwg.mxu0
        %v544 = vld [vmem:[%s407] sm:$0xff]
        %v545 = vld [vmem:[%s407 + $0x8] sm:$0xff]
        %v546 = vld [vmem:[%s407 + $0x10] sm:$0xff]
        %v547 = vld [vmem:[%s407 + $0x18] sm:$0xff]
        %v549 = vsel %vm485, %v544, 0
        %v552 = vsel %vm485, %v545, 0
        %554 = vmatpush.xpose.msra.mxu0 0.0
        %555 = vmatpush.xpose.msra.mxu0 0.0
        %556 = vmatpush.xpose.msra.mxu0 0.0
        %557 = vmatpush.xpose.msra.mxu0 0.0
        %558 = vmatpush.xpose.msra.mxu0 0.0
        %559 = vmatpush.xpose.msra.mxu0 0.0
        %560 = vmatpush.xpose.msra.mxu0 0.0
        %561 = vmatpush.xpose.msra.mxu0 0.0
        %562 = vmatpush.xpose.msra.mxu0 0.0
        %563 = vmatpush.xpose.msra.mxu0 0.0
        %564 = vmatpush.xpose.msra.mxu0 0.0
        %565 = vmatpush.xpose.msra.mxu0 0.0
        %566 = vmatpush.xpose.msra.mxu0 0.0
        %567 = vmatpush.xpose.msra.mxu0 0.0
        %568 = vmatpush.xpose.msra.mxu0 %v552
        %569 = vmatpush.xpose.msra.mxu0 %v549
        %570 = vmatmul.f32.gmra.mxu0 %v487
        %v571 = vpop.f32.mrf.mxu0
        %v572 = vadd.f32 0.0, %v571
        %573 = vdwg.mxu0
        %v575 = vsel %vm485, %v546, 0
        %v578 = vsel %vm485, %v547, 0
        %580 = vmatpush.xpose.msra.mxu0 0.0
        %581 = vmatpush.xpose.msra.mxu0 0.0
        %582 = vmatpush.xpose.msra.mxu0 0.0
        %583 = vmatpush.xpose.msra.mxu0 0.0
        %584 = vmatpush.xpose.msra.mxu0 0.0
        %585 = vmatpush.xpose.msra.mxu0 0.0
        %586 = vmatpush.xpose.msra.mxu0 0.0
        %587 = vmatpush.xpose.msra.mxu0 0.0
        %588 = vmatpush.xpose.msra.mxu0 0.0
        %589 = vmatpush.xpose.msra.mxu0 0.0
        %590 = vmatpush.xpose.msra.mxu0 0.0
        %591 = vmatpush.xpose.msra.mxu0 0.0
        %592 = vmatpush.xpose.msra.mxu0 0.0
        %593 = vmatpush.xpose.msra.mxu0 0.0
        %594 = vmatpush.xpose.msra.mxu0 %v578
        %595 = vmatpush.xpose.msra.mxu0 %v575
        %596 = vmatmul.f32.gmra.mxu0 %v516
        %v597 = vpop.f32.mrf.mxu0
        %v598 = vadd.f32 0.0, %v597
        %599 = vdwg.mxu0
        %v600 = vld [vmem:[%s397] sm:$0x1]
        %v601 = vld [vmem:[%s397 + $0x1] sm:$0x1]
        %v604 = vperm.slane %v600, 0
        %v605 = vperm.slane %v601, 0
        %v608 = vmul.f32 %v513, %v604
        %v609 = vmul.f32 %v542, %v605
        %v610 = vld [vmem:[%s417] sm:$0x1]
        %v611 = vld [vmem:[%s417 + $0x1] sm:$0x1]
        %v614 = vperm.slane %v610, 0
        %v615 = vperm.slane %v611, 0
        %v618 = vmul.f32 %v572, %v614
        %v619 = vmul.f32 %v598, %v615
        %vm620 = vcmask 130048
        %v621 = vsel %vm620, %v608, -inf
        %622 = vmax.xlane.f32.xlu0 %v621
        %v623 = vpop.xlane.xlu0 %622
        %v624 = vsel %vm620, %v609, -inf
        %625 = vmax.xlane.f32.xlu0 %v624
        %v626 = vpop.xlane.xlu0 %625
        %v627 = vsel %vm620, %v618, -inf
        %628 = vmax.xlane.f32.xlu0 %v627
        %v629 = vpop.xlane.xlu0 %628
        %v630 = vsel %vm620, %v619, -inf
        %631 = vmax.xlane.f32.xlu0 %v630
        %v632 = vpop.xlane.xlu0 %631
        %v633 = vld [vmem:[%s377] sm:$0x1]
        %v634 = vld [vmem:[%s377 + $0x1] sm:$0x1]
        %v637 = vperm.slane %v633, 0
        %v638 = vperm.slane %v634, 0
        %v639 = vlaneseq
        %v640 = vshrl.u32 %v639, 7
        %642 = vset.pattern.permute.xlu0 %v640
        %643 = vperm.xlu0 %642, %v637
        %v644 = vpop.permute.xlu0 %643
        %v645 = vlaneseq
        %v646 = vshrl.u32 %v645, 7
        %648 = vset.pattern.permute.xlu0 %v646
        %649 = vperm.xlu0 %648, %v638
        %v650 = vpop.permute.xlu0 %649
        %v653 = vmul.f32 %v623, %v644
        %v654 = vmul.f32 %v626, %v650
        %657 = vset.pattern.permute.xlu0 0
        %658 = vperm.xlu0 %657, %v653
        %v659 = vpop.permute.xlu0 %658
        %660 = vset.pattern.permute.xlu0 0
        %661 = vperm.xlu0 %660, %v654
        %v662 = vpop.permute.xlu0 %661
        %v663 = vlaneseq
        %v664 = vand.u32 %v663, 127
        %v665 = vperm.slane %v659, %v664
        %v666 = vperm.slane %v662, %v664
        %vm667 = vcmask 1041409
        %v668 = vsel %vm667, %v666, %v665
        %vm670 = vcmask 58368
        %v671 = vsel %vm670, %v668, 0.0
        %672 = vadd.xlane.f32.xlu0 %v671
        %v673 = vpop.xlane.xlu0 %672
        %v674 = vmul.f32 %v629, %v644
        %v675 = vmul.f32 %v632, %v650
        %678 = vset.pattern.permute.xlu0 0
        %679 = vperm.xlu0 %678, %v674
        %v680 = vpop.permute.xlu0 %679
        %681 = vset.pattern.permute.xlu0 0
        %682 = vperm.xlu0 %681, %v675
        %v683 = vpop.permute.xlu0 %682
        %v684 = vperm.slane %v680, %v664
        %v685 = vperm.slane %v683, %v664
        %v686 = vsel %vm667, %v685, %v684
        %v688 = vsel %vm670, %v686, 0.0
        %689 = vadd.xlane.f32.xlu0 %v688
        %v690 = vpop.xlane.xlu0 %689
        %v691 = vmax.f32 %v673, %v690
        %v692 = vsub.f32 %v673, %v691
        %v693 = vmul.f32 %v692, 1.442695
        %v694 = vpow.pop %v693
        %v695 = vsub.f32 %v690, %v691
        %v696 = vmul.f32 %v695, 1.442695
        %v697 = vpow.pop %v696
        %v698 = vadd.f32 %v694, %v697
        %v699 = vlog2.pop %v698
        %v700 = vmul.f32 %v699, 0.6931472
        %v701 = vadd.f32 %v691, %v700
        %v702 = vsub.f32 %v701, %v673
        %v704 = vperm.slane %v702, %v664
        %vm706 = vcmask 8192
        %707 = vst.msk [vmem:[%s478] sm:$0x1] %vm706, %v704
        %p708 = scmp.lt.s32.totalorder %s29, 3
        %s709 = scalar_select %p708, %s29, 3
        %s710 = scalar_lea.vmem %s6, %s709
        // Predicated region
        $region69: #{tpu_custom_call.1} parent=43 // pred_check
          %p711 = pneg %p203
        $region70: #{tpu_custom_call.1} parent=43 // pred_check_branch
          %713 = sbr.rel (%p711) target = $region72
        $region71: #{tpu_custom_call.1} parent=43 // pred_region
          _
        $region72: #{tpu_custom_call.1} parent=43 // pred_fallthru
          _
      $region44: #{tpu_custom_call.1} parent=5 // pred_fallthru
        _
      %p714 = scmp.le.s32.totalorder 2, %s24
      // Predicated region
      $region73: #{tpu_custom_call.1} parent=5 // pred_check
        %p715 = pneg %p714
      $region74: #{tpu_custom_call.1} parent=5 // pred_check_branch
        %717 = sbr.rel (%p715) target = $region76
      $region75: #{tpu_custom_call.1} parent=5 // pred_region
        %s718 = ssub.s32 %s24, 2
        // Predicated region
        $region77: #{tpu_custom_call.1} parent=75 // pred_check
          %p719 = pneg %p209
        $region78: #{tpu_custom_call.1} parent=75 // pred_check_branch
          %721 = sbr.rel (%p719) target = $region80
        $region79: #{tpu_custom_call.1} parent=75 // pred_region
          %p722 = scmp.lt.s32.totalorder %s30, 3
          %s723 = scalar_select %p722, %s30, 3
          %s724 = scalar_lea.vmem %s6, %s723
        $region80: #{tpu_custom_call.1} parent=75 // pred_fallthru
          _
      $region76: #{tpu_custom_call.1} parent=5 // pred_fallthru
        _
    $region6: #{tpu_custom_call.1} parent=1 // loop_footer
      %s28 = sadd.s32 1, %s24
    $region7: #{tpu_custom_call.1} parent=1 // loop_footer_branch
      %23 = sbr.rel target = $region3
    $region8: #{tpu_custom_call.1} parent=1 // loop_exit
      _
    %725 = vsyncpa [#allocation3], 1
    %s726 = scalar_lea.sflag [#allocation3], 1
    %727 = vsyncpa %s726, 1
    %728 = vsyncpa [#allocation5], 1
    %s729 = scalar_lea.sflag [#allocation5], 1
    %730 = vsyncpa %s729, 1
    %731 = vsyncpa [#allocation8], 1
    %s732 = scalar_lea.sflag [#allocation8], 1
    %733 = vsyncpa %s732, 1
    %734 = vsyncpa [#allocation11], 1
    %s735 = scalar_lea.sflag [#allocation11], 1
    %736 = vsyncpa %s735, 1

</llo_original>
